<compile_context>
chip_gen: v6e
topology: v6e:2x2x1
jax: 0.10.0
libtpu: 0.0.40
codegen_flags: <defaults>
</compile_context>

<pallas_src>
import jax
import jax.numpy as jnp
import numpy as np
from jax import lax
from jax.experimental import pallas as pl
from jax.experimental.pallas import tpu as pltpu

# ------------------------- model dimensions (small) -------------------------
B = 2          # batch
S = 8          # sequence length (number of net-state steps)
D_STATE = 16   # raw net-state feature dim
E = 32         # plm_embed_size
H = 64         # MLP hidden dim
A = 4          # number of actions (head output dim)
LN_EPS = 1e-5

# ---------------- packed-parameter slab layout: (P_ROWS, 128) ---------------
OFF_ENC = 0                       # w_enc  : (D_STATE, E)
OFF_WQ = OFF_ENC + D_STATE        # w_q    : (E, E)
OFF_WK = OFF_WQ + E               # w_k    : (E, E)
OFF_WV = OFF_WK + E               # w_v    : (E, E)
OFF_WO = OFF_WV + E               # w_o    : (E, E)
OFF_W1 = OFF_WO + E               # w_1    : (E, H)
OFF_W2 = OFF_W1 + E               # w_2    : (H, E)
OFF_HEAD = OFF_W2 + H             # w_head : (E, 128) (zero-padded past A)
OFF_VEC = OFF_HEAD + E            # 10 bias / LN-vector rows (padded to 16)
OFF_SEL = OFF_VEC + 16            # B last-position selector rows (padded to 8)
OFF_MASK = OFF_SEL + 8            # B same-batch additive-mask rows (padded to 8)
P_ROWS = OFF_MASK + 8             # = 304, multiple of 8


# ------------------------------- Pallas kernel ------------------------------
def _layernorm(z, g, b):
    # E[z^2] - E[z]^2 form: the two lane-reductions have no serial dependency,
    # so they pipeline on the XLU (centered form has reduce -> sub -> reduce).
    mu = jnp.mean(z, axis=-1, keepdims=True)
    ms = jnp.mean(z * z, axis=-1, keepdims=True)
    var = ms - mu * mu
    return (z - mu) * lax.rsqrt(var + LN_EPS) * g + b


def llmcc_kernel(x_ref, p_ref, out_ref):
    # x_ref: (B*S, D_STATE)   p_ref: (P_ROWS, 128)   out_ref: (B, 128)
    x = x_ref[...]

    # --- static slices of the packed parameter slab ---
    w_enc = p_ref[OFF_ENC:OFF_ENC + D_STATE, 0:E]          # (D_STATE, E)
    w_q = p_ref[OFF_WQ:OFF_WQ + E, 0:E]                    # (E, E)
    w_k = p_ref[OFF_WK:OFF_WK + E, 0:E]                    # (E, E)
    w_v = p_ref[OFF_WV:OFF_WV + E, 0:E]                    # (E, E)
    w_o = p_ref[OFF_WO:OFF_WO + E, 0:E]                    # (E, E)
    w_1 = p_ref[OFF_W1:OFF_W1 + E, 0:H]                    # (E, H)
    w_2 = p_ref[OFF_W2:OFF_W2 + H, 0:E]                    # (H, E)
    w_head = p_ref[OFF_HEAD:OFF_HEAD + E, :]               # (E, 128) lane-dense

    b_enc = p_ref[OFF_VEC + 0:OFF_VEC + 1, 0:E]
    ln1_g = p_ref[OFF_VEC + 1:OFF_VEC + 2, 0:E]
    ln1_b = p_ref[OFF_VEC + 2:OFF_VEC + 3, 0:E]
    ln2_g = p_ref[OFF_VEC + 3:OFF_VEC + 4, 0:E]
    ln2_b = p_ref[OFF_VEC + 4:OFF_VEC + 5, 0:E]
    lnf_g = p_ref[OFF_VEC + 5:OFF_VEC + 6, 0:E]
    lnf_b = p_ref[OFF_VEC + 6:OFF_VEC + 7, 0:E]
    b1 = p_ref[OFF_VEC + 7:OFF_VEC + 8, 0:H]
    b2 = p_ref[OFF_VEC + 8:OFF_VEC + 9, 0:E]
    b_head = p_ref[OFF_VEC + 9:OFF_VEC + 10, :]            # (1, 128)

    sel = p_ref[OFF_SEL:OFF_SEL + B, 0:B * S]              # (B, BS) one-hot
    mbias = p_ref[OFF_MASK:OFF_MASK + B, 0:B * S]          # (B, BS) 0 / -1e30

    # --- NetStateEncoder: Linear(D_STATE -> E), all B*S rows at once ---
    h = jnp.dot(x, w_enc, preferred_element_type=jnp.float32) + b_enc   # (BS, E)

    # --- pre-LN attention: K/V for all rows, Q only for last rows ---
    a_in = _layernorm(h, ln1_g, ln1_b)                                  # (BS, E)
    k = jnp.dot(a_in, w_k, preferred_element_type=jnp.float32)          # (BS, E)
    v = jnp.dot(a_in, w_v, preferred_element_type=jnp.float32)          # (BS, E)

    # Last sequence position of each batch element via selector matmul.
    a_last = jnp.dot(sel, a_in, preferred_element_type=jnp.float32)     # (B, E)
    h_last = jnp.dot(sel, h, preferred_element_type=jnp.float32)        # (B, E)
    q_last = jnp.dot(a_last, w_q, preferred_element_type=jnp.float32)   # (B, E)

    # scores: last query of each batch vs all B*S keys; contract last dims
    # (no explicit k transpose), then add the precomputed same-batch mask.
    scores = lax.dot_general(q_last, k, (((1,), (1,)), ((), ())),
                             preferred_element_type=jnp.float32)        # (B, BS)
    scores = scores * (1.0 / (E ** 0.5)) + mbias
    # Row-max subtraction dropped: post-scale scores are O(1) here and masked
    # entries (-1e30) underflow exp() to exactly 0.  Re-add the max if score
    # magnitude becomes unbounded (trained weights of arbitrary scale).
    p = jnp.exp(scores)
    p = p * pl.reciprocal(jnp.sum(p, axis=-1, keepdims=True), approx=True)

    attn = jnp.dot(p, v, preferred_element_type=jnp.float32)            # (B, E)
    attn = jnp.dot(attn, w_o, preferred_element_type=jnp.float32)       # (B, E)
    h_last = h_last + attn

    # --- MLP + final LayerNorm, last positions only ---
    m_in = _layernorm(h_last, ln2_g, ln2_b)
    m = jnp.dot(m_in, w_1, preferred_element_type=jnp.float32) + b1     # (B, H)
    m = jax.nn.gelu(m, approximate=True)
    m = jnp.dot(m, w_2, preferred_element_type=jnp.float32) + b2        # (B, E)
    h_last = h_last + m

    h_last = _layernorm(h_last, lnf_g, lnf_b)                           # (B, E)

    # --- ActionClassificationHead: lane-dense (E, 128) weight -> (B, 128) ---
    out_ref[...] = (jnp.dot(h_last, w_head, preferred_element_type=jnp.float32)
                    + b_head)


# ----------------------------- parameter packing ----------------------------
def pack_params(params):
    """Packs all parameters + constant selector/mask into one (P_ROWS, 128)
    slab.  Called ONCE at init (params are static), not on the per-call path."""
    (w_enc, b_enc, wq, wk, wv, wo, ln1_g, ln1_b,
     w1, b1, w2, b2, ln2_g, ln2_b, lnf_g, lnf_b, w_head, b_head) = params

    def pad_cols(w):
        return jnp.pad(w, ((0, 0), (0, 128 - w.shape[1])))

    # bias / LN vectors: 10 rows, padded to 16
    vecs = [b_enc, ln1_g, ln1_b, ln2_g, ln2_b, lnf_g, lnf_b, b1, b2, b_head]
    vec_rows = [pad_cols(v.reshape(1, -1)) for v in vecs]
    vec_rows.append(jnp.zeros((16 - len(vec_rows), 128), jnp.float32))

    # last-position one-hot selector rows (B, 128), padded to 8 rows
    sel_np = np.zeros((8, 128), np.float32)
    for b in range(B):
        sel_np[b, b * S + (S - 1)] = 1.0

    # same-batch additive mask rows (B, 128), padded to 8 rows
    mask_np = np.full((8, 128), -1e30, np.float32)
    for b in range(B):
        mask_np[b, b * S:(b + 1) * S] = 0.0

    slab = jnp.concatenate([
        pad_cols(w_enc),                 # rows [OFF_ENC,  OFF_ENC  + D_STATE)
        pad_cols(wq),                    # rows [OFF_WQ,   OFF_WQ   + E)
        pad_cols(wk),                    # rows [OFF_WK,   OFF_WK   + E)
        pad_cols(wv),                    # rows [OFF_WV,   OFF_WV   + E)
        pad_cols(wo),                    # rows [OFF_WO,   OFF_WO   + E)
        pad_cols(w1),                    # rows [OFF_W1,   OFF_W1   + E)
        pad_cols(w2),                    # rows [OFF_W2,   OFF_W2   + H)
        pad_cols(w_head),                # rows [OFF_HEAD, OFF_HEAD + E)
        jnp.concatenate(vec_rows, 0),    # rows [OFF_VEC,  OFF_VEC  + 16)
        jnp.asarray(sel_np),             # rows [OFF_SEL,  OFF_SEL  + 8)
        jnp.asarray(mask_np),            # rows [OFF_MASK, OFF_MASK + 8)
    ], axis=0)
    assert slab.shape == (P_ROWS, 128), slab.shape
    return slab


# --------------------------------- wrapper ----------------------------------
@jax.jit
def llmcc_forward(net_states, p_slab):
    """net_states: (B, S, D_STATE) f32, p_slab: (P_ROWS, 128) f32 -> (B, A)."""
    x2d = net_states.reshape(B * S, D_STATE)   # flatten (B,S) onto sublanes

    out_pad = pl.pallas_call(
        llmcc_kernel,
        out_shape=jax.ShapeDtypeStruct((B, 128), jnp.float32),
        # no grid: single invocation, whole arrays resident in VMEM,
        # no pipelining machinery / double buffering.
        in_specs=[
            pl.BlockSpec(memory_space=pltpu.MemorySpace.VMEM),
            pl.BlockSpec(memory_space=pltpu.MemorySpace.VMEM),
        ],
        out_specs=pl.BlockSpec(memory_space=pltpu.MemorySpace.VMEM),
    )(x2d, p_slab)
    return out_pad[:, :A]


# -------------------------- pure-JAX reference check ------------------------
def llmcc_reference(net_states, params):
    (w_enc, b_enc, wq, wk, wv, wo, ln1_g, ln1_b,
     w1, b1, w2, b2, ln2_g, ln2_b, lnf_g, lnf_b, w_head, b_head) = params

    def ln(z, g, b):
        mu = jnp.mean(z, axis=-1, keepdims=True)
        var = jnp.mean((z - mu) ** 2, axis=-1, keepdims=True)
        return (z - mu) * lax.rsqrt(var + LN_EPS) * g + b

    h = net_states @ w_enc + b_enc                                   # (B, S, E)
    a_in = ln(h, ln1_g, ln1_b)
    q, k, v = a_in @ wq, a_in @ wk, a_in @ wv
    scores = jnp.einsum('bqe,bke->bqk', q, k) / (E ** 0.5)
    mask = jnp.tril(jnp.ones((S, S), dtype=bool))
    scores = jnp.where(mask, scores, -1e30)
    p = jax.nn.softmax(scores, axis=-1)
    attn = jnp.einsum('bqk,bke->bqe', p, v) @ wo
    h = h + attn
    m = jax.nn.gelu(ln(h, ln2_g, ln2_b) @ w1 + b1, approximate=True) @ w2 + b2
    h = h + m
    h = ln(h, lnf_g, lnf_b)
    last = h[:, -1, :]
    return last @ w_head + b_head


# ------------------------ deterministic parameter init ----------------------
def init_params(key):
    ks = jax.random.split(key, 12)

    def dense(k, shape, fan_in):
        return jax.random.normal(k, shape, jnp.float32) / jnp.sqrt(fan_in)

    w_enc = dense(ks[0], (D_STATE, E), D_STATE)
    b_enc = jnp.zeros((1, E), jnp.float32)
    wq = dense(ks[1], (E, E), E)
    wk = dense(ks[2], (E, E), E)
    wv = dense(ks[3], (E, E), E)
    wo = dense(ks[4], (E, E), E)
    ln1_g = jnp.ones((1, E), jnp.float32)
    ln1_b = jnp.zeros((1, E), jnp.float32)
    w1 = dense(ks[5], (E, H), E)
    b1 = jnp.zeros((1, H), jnp.float32)
    w2 = dense(ks[6], (H, E), H)
    b2 = jnp.zeros((1, E), jnp.float32)
    ln2_g = jnp.ones((1, E), jnp.float32)
    ln2_b = jnp.zeros((1, E), jnp.float32)
    lnf_g = jnp.ones((1, E), jnp.float32)
    lnf_b = jnp.zeros((1, E), jnp.float32)
    w_head = dense(ks[7], (E, A), E)
    b_head = jnp.zeros((1, A), jnp.float32)
    return (w_enc, b_enc, wq, wk, wv, wo, ln1_g, ln1_b,
            w1, b1, w2, b2, ln2_g, ln2_b, lnf_g, lnf_b, w_head, b_head)


if __name__ == "__main__":
    key = jax.random.PRNGKey(0)
    k_x, k_p = jax.random.split(key)
    net_states = jax.random.normal(k_x, (B, S, D_STATE), jnp.float32)
    params = init_params(k_p)

    # Pack once at init (params are static); the jitted forward only sees the
    # ready-made slab — no per-call pad/concat HBM traffic.
    p_slab = jax.block_until_ready(pack_params(params))

    out = jax.block_until_ready(llmcc_forward(net_states, p_slab))
    ref = jax.block_until_ready(llmcc_reference(net_states, params))

    assert out.shape == (B, A), out.shape
    # approx=True reciprocal (~2^-12 rel err), max-free softmax and the
    # E[z^2]-E[z]^2 LN variance form are all comfortably within 1e-3.
    assert jnp.allclose(out, ref, atol=1e-3, rtol=1e-3), (out, ref)
    print("KERNEL_OK")
</pallas_src>

<mosaic_0001>
module attributes {stable_mosaic.version = 11 : i64} {
  func.func @llmcc_kernel(%arg0: memref<16x16xf32, #tpu.memory_space<vmem>>, %arg1: memref<304x128xf32, #tpu.memory_space<vmem>>, %arg2: memref<2x128xf32, #tpu.memory_space<vmem>>) attributes {dimension_semantics = [], scalar_prefetch = 0 : i64, scratch_operands = 0 : i64, tpu.core_type = #tpu.core_type<tc>} {
    %c0 = arith.constant 0 : index
    %c0_0 = arith.constant 0 : index
    %0 = vector.load %arg0[%c0, %c0_0] : memref<16x16xf32, #tpu.memory_space<vmem>>, vector<16x16xf32>
    %c0_1 = arith.constant 0 : index
    %c0_2 = arith.constant 0 : index
    %1 = vector.load %arg1[%c0_1, %c0_2] : memref<304x128xf32, #tpu.memory_space<vmem>>, vector<16x32xf32>
    %c16 = arith.constant 16 : index
    %c0_3 = arith.constant 0 : index
    %2 = vector.load %arg1[%c16, %c0_3] : memref<304x128xf32, #tpu.memory_space<vmem>>, vector<32x32xf32>
    %c48 = arith.constant 48 : index
    %c0_4 = arith.constant 0 : index
    %3 = vector.load %arg1[%c48, %c0_4] : memref<304x128xf32, #tpu.memory_space<vmem>>, vector<32x32xf32>
    %c80 = arith.constant 80 : index
    %c0_5 = arith.constant 0 : index
    %4 = vector.load %arg1[%c80, %c0_5] : memref<304x128xf32, #tpu.memory_space<vmem>>, vector<32x32xf32>
    %c112 = arith.constant 112 : index
    %c0_6 = arith.constant 0 : index
    %5 = vector.load %arg1[%c112, %c0_6] : memref<304x128xf32, #tpu.memory_space<vmem>>, vector<32x32xf32>
    %c144 = arith.constant 144 : index
    %c0_7 = arith.constant 0 : index
    %6 = vector.load %arg1[%c144, %c0_7] : memref<304x128xf32, #tpu.memory_space<vmem>>, vector<32x64xf32>
    %c176 = arith.constant 176 : index
    %c0_8 = arith.constant 0 : index
    %7 = vector.load %arg1[%c176, %c0_8] : memref<304x128xf32, #tpu.memory_space<vmem>>, vector<64x32xf32>
    %c240 = arith.constant 240 : index
    %c0_9 = arith.constant 0 : index
    %8 = vector.load %arg1[%c240, %c0_9] : memref<304x128xf32, #tpu.memory_space<vmem>>, vector<32x128xf32>
    %c272 = arith.constant 272 : index
    %c0_10 = arith.constant 0 : index
    %9 = vector.load %arg1[%c272, %c0_10] : memref<304x128xf32, #tpu.memory_space<vmem>>, vector<1x32xf32>
    %c273 = arith.constant 273 : index
    %c0_11 = arith.constant 0 : index
    %10 = vector.load %arg1[%c273, %c0_11] : memref<304x128xf32, #tpu.memory_space<vmem>>, vector<1x32xf32>
    %c274 = arith.constant 274 : index
    %c0_12 = arith.constant 0 : index
    %11 = vector.load %arg1[%c274, %c0_12] : memref<304x128xf32, #tpu.memory_space<vmem>>, vector<1x32xf32>
    %c275 = arith.constant 275 : index
    %c0_13 = arith.constant 0 : index
    %12 = vector.load %arg1[%c275, %c0_13] : memref<304x128xf32, #tpu.memory_space<vmem>>, vector<1x32xf32>
    %c276 = arith.constant 276 : index
    %c0_14 = arith.constant 0 : index
    %13 = vector.load %arg1[%c276, %c0_14] : memref<304x128xf32, #tpu.memory_space<vmem>>, vector<1x32xf32>
    %c277 = arith.constant 277 : index
    %c0_15 = arith.constant 0 : index
    %14 = vector.load %arg1[%c277, %c0_15] : memref<304x128xf32, #tpu.memory_space<vmem>>, vector<1x32xf32>
    %c278 = arith.constant 278 : index
    %c0_16 = arith.constant 0 : index
    %15 = vector.load %arg1[%c278, %c0_16] : memref<304x128xf32, #tpu.memory_space<vmem>>, vector<1x32xf32>
    %c279 = arith.constant 279 : index
    %c0_17 = arith.constant 0 : index
    %16 = vector.load %arg1[%c279, %c0_17] : memref<304x128xf32, #tpu.memory_space<vmem>>, vector<1x64xf32>
    %c280 = arith.constant 280 : index
    %c0_18 = arith.constant 0 : index
    %17 = vector.load %arg1[%c280, %c0_18] : memref<304x128xf32, #tpu.memory_space<vmem>>, vector<1x32xf32>
    %c281 = arith.constant 281 : index
    %c0_19 = arith.constant 0 : index
    %18 = vector.load %arg1[%c281, %c0_19] : memref<304x128xf32, #tpu.memory_space<vmem>>, vector<1x128xf32>
    %c288 = arith.constant 288 : index
    %c0_20 = arith.constant 0 : index
    %19 = vector.load %arg1[%c288, %c0_20] : memref<304x128xf32, #tpu.memory_space<vmem>>, vector<2x16xf32>
    %c296 = arith.constant 296 : index
    %c0_21 = arith.constant 0 : index
    %20 = vector.load %arg1[%c296, %c0_21] : memref<304x128xf32, #tpu.memory_space<vmem>>, vector<2x16xf32>
    %cst = arith.constant dense<0.000000e+00> : vector<16x32xf32>
    %21 = tpu.matmul %0, %1, %cst {dimension_numbers = #tpu.dot_dimension_numbers<[1], [0], [0], [1], [0, 0, 1, 1], [], []>} : vector<16x16xf32>, vector<16x32xf32>, vector<16x32xf32> -> vector<16x32xf32>
    %22 = vector.broadcast %9 : vector<1x32xf32> to vector<16x32xf32>
    %23 = arith.addf %21, %22 : vector<16x32xf32>
    %cst_22 = arith.constant dense<0.000000e+00> : vector<16xf32>
    %24 = vector.multi_reduction <add>, %23, %cst_22 [1] : vector<16x32xf32> to vector<16xf32>
    %25 = vector.shape_cast %24 : vector<16xf32> to vector<16x1xf32>
    %cst_23 = arith.constant 3.200000e+01 : f32
    %26 = vector.broadcast %cst_23 : f32 to vector<16x1xf32>
    %27 = arith.divf %25, %26 : vector<16x1xf32>
    %28 = arith.mulf %23, %23 : vector<16x32xf32>
    %cst_24 = arith.constant dense<0.000000e+00> : vector<16xf32>
    %29 = vector.multi_reduction <add>, %28, %cst_24 [1] : vector<16x32xf32> to vector<16xf32>
    %30 = vector.shape_cast %29 : vector<16xf32> to vector<16x1xf32>
    %cst_25 = arith.constant 3.200000e+01 : f32
    %31 = vector.broadcast %cst_25 : f32 to vector<16x1xf32>
    %32 = arith.divf %30, %31 : vector<16x1xf32>
    %33 = arith.mulf %27, %27 : vector<16x1xf32>
    %34 = arith.subf %32, %33 : vector<16x1xf32>
    %35 = vector.broadcast %27 : vector<16x1xf32> to vector<16x32xf32>
    %36 = arith.subf %23, %35 : vector<16x32xf32>
    %cst_26 = arith.constant 9.99999974E-6 : f32
    %37 = vector.broadcast %cst_26 : f32 to vector<16x1xf32>
    %38 = arith.addf %34, %37 : vector<16x1xf32>
    %39 = math.rsqrt %38 : vector<16x1xf32>
    %40 = vector.broadcast %39 : vector<16x1xf32> to vector<16x32xf32>
    %41 = arith.mulf %36, %40 : vector<16x32xf32>
    %42 = vector.broadcast %10 : vector<1x32xf32> to vector<16x32xf32>
    %43 = arith.mulf %41, %42 : vector<16x32xf32>
    %44 = vector.broadcast %11 : vector<1x32xf32> to vector<16x32xf32>
    %45 = arith.addf %43, %44 : vector<16x32xf32>
    %cst_27 = arith.constant dense<0.000000e+00> : vector<16x32xf32>
    %46 = tpu.matmul %45, %3, %cst_27 {dimension_numbers = #tpu.dot_dimension_numbers<[1], [0], [0], [1], [0, 0, 1, 1], [], []>} : vector<16x32xf32>, vector<32x32xf32>, vector<16x32xf32> -> vector<16x32xf32>
    %cst_28 = arith.constant dense<0.000000e+00> : vector<16x32xf32>
    %47 = tpu.matmul %45, %4, %cst_28 {dimension_numbers = #tpu.dot_dimension_numbers<[1], [0], [0], [1], [0, 0, 1, 1], [], []>} : vector<16x32xf32>, vector<32x32xf32>, vector<16x32xf32> -> vector<16x32xf32>
    %cst_29 = arith.constant dense<0.000000e+00> : vector<2x32xf32>
    %48 = tpu.matmul %19, %45, %cst_29 {dimension_numbers = #tpu.dot_dimension_numbers<[1], [0], [0], [1], [0, 0, 1, 1], [], []>} : vector<2x16xf32>, vector<16x32xf32>, vector<2x32xf32> -> vector<2x32xf32>
    %cst_30 = arith.constant dense<0.000000e+00> : vector<2x32xf32>
    %49 = tpu.matmul %19, %23, %cst_30 {dimension_numbers = #tpu.dot_dimension_numbers<[1], [0], [0], [1], [0, 0, 1, 1], [], []>} : vector<2x16xf32>, vector<16x32xf32>, vector<2x32xf32> -> vector<2x32xf32>
    %cst_31 = arith.constant dense<0.000000e+00> : vector<2x32xf32>
    %50 = tpu.matmul %48, %2, %cst_31 {dimension_numbers = #tpu.dot_dimension_numbers<[1], [0], [0], [1], [0, 0, 1, 1], [], []>} : vector<2x32xf32>, vector<32x32xf32>, vector<2x32xf32> -> vector<2x32xf32>
    %cst_32 = arith.constant dense<0.000000e+00> : vector<2x16xf32>
    %51 = tpu.matmul %50, %46, %cst_32 {dimension_numbers = #tpu.dot_dimension_numbers<[1], [1], [0], [0], [0, 0, 1, 0], [], []>} : vector<2x32xf32>, vector<16x32xf32>, vector<2x16xf32> -> vector<2x16xf32>
    %cst_33 = arith.constant 0.176776692 : f32
    %52 = vector.broadcast %cst_33 : f32 to vector<2x16xf32>
    %53 = arith.mulf %51, %52 : vector<2x16xf32>
    %54 = arith.addf %53, %20 : vector<2x16xf32>
    %55 = math.exp %54 : vector<2x16xf32>
    %cst_34 = arith.constant dense<0.000000e+00> : vector<2xf32>
    %56 = vector.multi_reduction <add>, %55, %cst_34 [1] : vector<2x16xf32> to vector<2xf32>
    %57 = vector.shape_cast %56 : vector<2xf32> to vector<2x1xf32>
    %58 = tpu.reciprocal %57 {approx = true} : vector<2x1xf32> -> vector<2x1xf32>
    %59 = vector.broadcast %58 : vector<2x1xf32> to vector<2x16xf32>
    %60 = arith.mulf %55, %59 : vector<2x16xf32>
    %cst_35 = arith.constant dense<0.000000e+00> : vector<2x32xf32>
    %61 = tpu.matmul %60, %47, %cst_35 {dimension_numbers = #tpu.dot_dimension_numbers<[1], [0], [0], [1], [0, 0, 1, 1], [], []>} : vector<2x16xf32>, vector<16x32xf32>, vector<2x32xf32> -> vector<2x32xf32>
    %cst_36 = arith.constant dense<0.000000e+00> : vector<2x32xf32>
    %62 = tpu.matmul %61, %5, %cst_36 {dimension_numbers = #tpu.dot_dimension_numbers<[1], [0], [0], [1], [0, 0, 1, 1], [], []>} : vector<2x32xf32>, vector<32x32xf32>, vector<2x32xf32> -> vector<2x32xf32>
    %63 = arith.addf %49, %62 : vector<2x32xf32>
    %cst_37 = arith.constant dense<0.000000e+00> : vector<2xf32>
    %64 = vector.multi_reduction <add>, %63, %cst_37 [1] : vector<2x32xf32> to vector<2xf32>
    %65 = vector.shape_cast %64 : vector<2xf32> to vector<2x1xf32>
    %cst_38 = arith.constant 3.200000e+01 : f32
    %66 = vector.broadcast %cst_38 : f32 to vector<2x1xf32>
    %67 = arith.divf %65, %66 : vector<2x1xf32>
    %68 = arith.mulf %63, %63 : vector<2x32xf32>
    %cst_39 = arith.constant dense<0.000000e+00> : vector<2xf32>
    %69 = vector.multi_reduction <add>, %68, %cst_39 [1] : vector<2x32xf32> to vector<2xf32>
    %70 = vector.shape_cast %69 : vector<2xf32> to vector<2x1xf32>
    %cst_40 = arith.constant 3.200000e+01 : f32
    %71 = vector.broadcast %cst_40 : f32 to vector<2x1xf32>
    %72 = arith.divf %70, %71 : vector<2x1xf32>
    %73 = arith.mulf %67, %67 : vector<2x1xf32>
    %74 = arith.subf %72, %73 : vector<2x1xf32>
    %75 = vector.broadcast %67 : vector<2x1xf32> to vector<2x32xf32>
    %76 = arith.subf %63, %75 : vector<2x32xf32>
    %cst_41 = arith.constant 9.99999974E-6 : f32
    %77 = vector.broadcast %cst_41 : f32 to vector<2x1xf32>
    %78 = arith.addf %74, %77 : vector<2x1xf32>
    %79 = math.rsqrt %78 : vector<2x1xf32>
    %80 = vector.broadcast %79 : vector<2x1xf32> to vector<2x32xf32>
    %81 = arith.mulf %76, %80 : vector<2x32xf32>
    %82 = vector.broadcast %12 : vector<1x32xf32> to vector<2x32xf32>
    %83 = arith.mulf %81, %82 : vector<2x32xf32>
    %84 = vector.broadcast %13 : vector<1x32xf32> to vector<2x32xf32>
    %85 = arith.addf %83, %84 : vector<2x32xf32>
    %cst_42 = arith.constant dense<0.000000e+00> : vector<2x64xf32>
    %86 = tpu.matmul %85, %6, %cst_42 {dimension_numbers = #tpu.dot_dimension_numbers<[1], [0], [0], [1], [0, 0, 1, 1], [], []>} : vector<2x32xf32>, vector<32x64xf32>, vector<2x64xf32> -> vector<2x64xf32>
    %87 = vector.broadcast %16 : vector<1x64xf32> to vector<2x64xf32>
    %88 = arith.addf %86, %87 : vector<2x64xf32>
    %89 = arith.mulf %88, %88 : vector<2x64xf32>
    %90 = arith.mulf %88, %89 : vector<2x64xf32>
    %cst_43 = arith.constant 4.471500e-02 : f32
    %91 = vector.broadcast %cst_43 : f32 to vector<2x64xf32>
    %92 = arith.mulf %91, %90 : vector<2x64xf32>
    %93 = arith.addf %88, %92 : vector<2x64xf32>
    %cst_44 = arith.constant 0.797884583 : f32
    %94 = vector.broadcast %cst_44 : f32 to vector<2x64xf32>
    %95 = arith.mulf %94, %93 : vector<2x64xf32>
    %96 = math.tanh %95 : vector<2x64xf32>
    %cst_45 = arith.constant 1.000000e+00 : f32
    %97 = vector.broadcast %cst_45 : f32 to vector<2x64xf32>
    %98 = arith.addf %97, %96 : vector<2x64xf32>
    %cst_46 = arith.constant 5.000000e-01 : f32
    %99 = vector.broadcast %cst_46 : f32 to vector<2x64xf32>
    %100 = arith.mulf %99, %98 : vector<2x64xf32>
    %101 = arith.mulf %88, %100 : vector<2x64xf32>
    %cst_47 = arith.constant dense<0.000000e+00> : vector<2x32xf32>
    %102 = tpu.matmul %101, %7, %cst_47 {dimension_numbers = #tpu.dot_dimension_numbers<[1], [0], [0], [1], [0, 0, 1, 1], [], []>} : vector<2x64xf32>, vector<64x32xf32>, vector<2x32xf32> -> vector<2x32xf32>
    %103 = vector.broadcast %17 : vector<1x32xf32> to vector<2x32xf32>
    %104 = arith.addf %102, %103 : vector<2x32xf32>
    %105 = arith.addf %63, %104 : vector<2x32xf32>
    %cst_48 = arith.constant dense<0.000000e+00> : vector<2xf32>
    %106 = vector.multi_reduction <add>, %105, %cst_48 [1] : vector<2x32xf32> to vector<2xf32>
    %107 = vector.shape_cast %106 : vector<2xf32> to vector<2x1xf32>
    %cst_49 = arith.constant 3.200000e+01 : f32
    %108 = vector.broadcast %cst_49 : f32 to vector<2x1xf32>
    %109 = arith.divf %107, %108 : vector<2x1xf32>
    %110 = arith.mulf %105, %105 : vector<2x32xf32>
    %cst_50 = arith.constant dense<0.000000e+00> : vector<2xf32>
    %111 = vector.multi_reduction <add>, %110, %cst_50 [1] : vector<2x32xf32> to vector<2xf32>
    %112 = vector.shape_cast %111 : vector<2xf32> to vector<2x1xf32>
    %cst_51 = arith.constant 3.200000e+01 : f32
    %113 = vector.broadcast %cst_51 : f32 to vector<2x1xf32>
    %114 = arith.divf %112, %113 : vector<2x1xf32>
    %115 = arith.mulf %109, %109 : vector<2x1xf32>
    %116 = arith.subf %114, %115 : vector<2x1xf32>
    %117 = vector.broadcast %109 : vector<2x1xf32> to vector<2x32xf32>
    %118 = arith.subf %105, %117 : vector<2x32xf32>
    %cst_52 = arith.constant 9.99999974E-6 : f32
    %119 = vector.broadcast %cst_52 : f32 to vector<2x1xf32>
    %120 = arith.addf %116, %119 : vector<2x1xf32>
    %121 = math.rsqrt %120 : vector<2x1xf32>
    %122 = vector.broadcast %121 : vector<2x1xf32> to vector<2x32xf32>
    %123 = arith.mulf %118, %122 : vector<2x32xf32>
    %124 = vector.broadcast %14 : vector<1x32xf32> to vector<2x32xf32>
    %125 = arith.mulf %123, %124 : vector<2x32xf32>
    %126 = vector.broadcast %15 : vector<1x32xf32> to vector<2x32xf32>
    %127 = arith.addf %125, %126 : vector<2x32xf32>
    %cst_53 = arith.constant dense<0.000000e+00> : vector<2x128xf32>
    %128 = tpu.matmul %127, %8, %cst_53 {dimension_numbers = #tpu.dot_dimension_numbers<[1], [0], [0], [1], [0, 0, 1, 1], [], []>} : vector<2x32xf32>, vector<32x128xf32>, vector<2x128xf32> -> vector<2x128xf32>
    %129 = vector.broadcast %18 : vector<1x128xf32> to vector<2x128xf32>
    %130 = arith.addf %128, %129 : vector<2x128xf32>
    %c0_54 = arith.constant 0 : index
    %c0_55 = arith.constant 0 : index
    %131 = vector.load %arg2[%c0_54, %c0_55] : memref<2x128xf32, #tpu.memory_space<vmem>>, vector<2x128xf32>
    tpu.vector_store %arg2[%c0_54, %c0_55], %130 {strides = array<i32>} : memref<2x128xf32, #tpu.memory_space<vmem>>, vector<2x128xf32>,
    return
  }
}

</mosaic_0001>

<llo_original>
// kernel: llmcc_forward.1
$region0: #{llmcc_forward.1}
  #allocation0 [shape = 'u32[]', space=smem, size = 0x4, offset = 0x4, fixed_abs, tag = 'smem constant byte address 0x4 - core index']
  #allocation1 [shape = 'u32[144,128]{1,0:T(1,128)}', space=vmem, size = 0x12000, scoped, tag = 'internal scratch']
  %s0 = inlined_call_operand.hbm [shape: f32[16,16], index: 0, kind: input, shape index: {}]
  %s1 = inlined_call_operand.hbm [shape: f32[304,128], index: 1, kind: input, shape index: {}]
  %s2 = inlined_call_operand.hbm [shape: f32[2,128], index: 2, kind: output, shape index: {}]
  %s3 = sld [smem:[#allocation0]]
  $region26: #{llmcc_forward.1} parent=0
    _
  %s5 = ssub.s32 1, %s3
  %s6 = scalar_select 0, %s5, %s3
  $region1: #{llmcc_forward.1} parent=0
    #allocation2 [shape = 'u8[8192]{0}', space=vmem, size = 0x2000, scoped, tag = 'input window, operand 0, single buffered']
    #allocation3 [shape = 's32[1]{0}', space=sflag, size = 0x4, scoped, tag = 'scoped memory for llmcc_forward.1']
    #allocation4 [shape = 's32[1]{0}', space=sflag, size = 0x4, scoped, tag = 'scoped memory for llmcc_forward.1']
    #allocation5 [shape = 'u8[155648]{0}', space=vmem, size = 0x26000, scoped, tag = 'input window, operand 1, single buffered']
    #allocation6 [shape = 's32[1]{0}', space=sflag, size = 0x4, scoped, tag = 'scoped memory for llmcc_forward.1']
    #allocation7 [shape = 'u8[1024]{0}', space=vmem, size = 0x400, scoped, tag = 'output window, operand 0, single buffered']
    %7 = vsyncpa [#allocation3], 0
    %8 = vsyncpa [#allocation6], 0
    %9 = vsyncpa [#allocation4], 0
    // Predicated region
    $region2: #{llmcc_forward.1} parent=1 // pred_check
      _
    $region3: #{llmcc_forward.1} parent=1 // pred_check_branch
      %11 = sbr.rel (0) target = $region5
    $region4: #{llmcc_forward.1} parent=1 // pred_region
      %s13 = ssub.s32 256, 256
      %14 = vsyncadd [#allocation3], %s13
      %s15 = sshll.u32 [#allocation2], 4
      %s16 = int_to_ptr.vmem [resolvable:$true] %s15
      %21 = dma.hbm_to_vmem [thread:$0]  %s0, 256, %s16, [#allocation3], 128, 128, 8
    $region5: #{llmcc_forward.1} parent=1 // pred_fallthru
      _
    // Predicated region
    $region6: #{llmcc_forward.1} parent=1 // pred_check
      _
    $region7: #{llmcc_forward.1} parent=1 // pred_check_branch
      %23 = sbr.rel (0) target = $region9
    $region8: #{llmcc_forward.1} parent=1 // pred_region
      %s25 = ssub.s32 4864, 4864
      %26 = vsyncadd [#allocation6], %s25
      %s27 = sshll.u32 [#allocation5], 4
      %s28 = int_to_ptr.vmem [resolvable:$true] %s27
      %33 = dma.hbm_to_vmem [thread:$0]  %s1, 4864, %s28, [#allocation6], 128, 128, 8
    $region9: #{llmcc_forward.1} parent=1 // pred_fallthru
      _
    // Predicated region
    $region10: #{llmcc_forward.1} parent=1 // pred_check
      _
    $region11: #{llmcc_forward.1} parent=1 // pred_check_branch
      %35 = sbr.rel (0) target = $region13
    $region12: #{llmcc_forward.1} parent=1 // pred_region
      %36 = dma.done [#allocation3], 256
    $region13: #{llmcc_forward.1} parent=1 // pred_fallthru
      _
    // Predicated region
    $region14: #{llmcc_forward.1} parent=1 // pred_check
      _
    $region15: #{llmcc_forward.1} parent=1 // pred_check_branch
      %38 = sbr.rel (0) target = $region17
    $region16: #{llmcc_forward.1} parent=1 // pred_region
      %39 = dma.done [#allocation6], 4864
    $region17: #{llmcc_forward.1} parent=1 // pred_fallthru
      _
    %v40 = vld [vmem:[#allocation2] sm:$0xff]
    %v41 = vld [vmem:[#allocation2 + $0x8] sm:$0xff]
    %v42 = vld [vmem:[#allocation5] sm:$0xff]
    %v43 = vld [vmem:[#allocation5 + $0x8] sm:$0xff]
    %v44 = vld [vmem:[#allocation5 + $0x10] sm:$0xff]
    %v45 = vld [vmem:[#allocation5 + $0x18] sm:$0xff]
    %v46 = vld [vmem:[#allocation5 + $0x20] sm:$0xff]
    %v47 = vld [vmem:[#allocation5 + $0x28] sm:$0xff]
    %v48 = vld [vmem:[#allocation5 + $0x30] sm:$0xff]
    %v49 = vld [vmem:[#allocation5 + $0x38] sm:$0xff]
    %v50 = vld [vmem:[#allocation5 + $0x40] sm:$0xff]
    %v51 = vld [vmem:[#allocation5 + $0x48] sm:$0xff]
    %v52 = vld [vmem:[#allocation5 + $0x50] sm:$0xff]
    %v53 = vld [vmem:[#allocation5 + $0x58] sm:$0xff]
    %v54 = vld [vmem:[#allocation5 + $0x60] sm:$0xff]
    %v55 = vld [vmem:[#allocation5 + $0x68] sm:$0xff]
    %v56 = vld [vmem:[#allocation5 + $0x70] sm:$0xff]
    %v57 = vld [vmem:[#allocation5 + $0x78] sm:$0xff]
    %v58 = vld [vmem:[#allocation5 + $0x80] sm:$0xff]
    %v59 = vld [vmem:[#allocation5 + $0x88] sm:$0xff]
    %v60 = vld [vmem:[#allocation5 + $0x90] sm:$0xff]
    %v61 = vld [vmem:[#allocation5 + $0x98] sm:$0xff]
    %v62 = vld [vmem:[#allocation5 + $0xa0] sm:$0xff]
    %v63 = vld [vmem:[#allocation5 + $0xa8] sm:$0xff]
    %v64 = vld [vmem:[#allocation5 + $0xb0] sm:$0xff]
    %v65 = vld [vmem:[#allocation5 + $0xb8] sm:$0xff]
    %v66 = vld [vmem:[#allocation5 + $0xc0] sm:$0xff]
    %v67 = vld [vmem:[#allocation5 + $0xc8] sm:$0xff]
    %v68 = vld [vmem:[#allocation5 + $0xd0] sm:$0xff]
    %v69 = vld [vmem:[#allocation5 + $0xd8] sm:$0xff]
    %v70 = vld [vmem:[#allocation5 + $0xe0] sm:$0xff]
    %v71 = vld [vmem:[#allocation5 + $0xe8] sm:$0xff]
    %v72 = vld [vmem:[#allocation5 + $0xf0] sm:$0xff]
    %v73 = vld [vmem:[#allocation5 + $0xf8] sm:$0xff]
    %v74 = vld [vmem:[#allocation5 + $0x100] sm:$0xff]
    %v75 = vld [vmem:[#allocation5 + $0x108] sm:$0xff]
    %v76 = vld [vmem:[#allocation5 + $0x110] sm:$0x1]
    %v77 = vld [vmem:[#allocation5 + $0x111] sm:$0x1]
    %v78 = vld [vmem:[#allocation5 + $0x112] sm:$0x1]
    %v79 = vld [vmem:[#allocation5 + $0x113] sm:$0x1]
    %v80 = vld [vmem:[#allocation5 + $0x114] sm:$0x1]
    %v81 = vld [vmem:[#allocation5 + $0x115] sm:$0x1]
    %v82 = vld [vmem:[#allocation5 + $0x116] sm:$0x1]
    %v83 = vld [vmem:[#allocation5 + $0x117] sm:$0x1]
    %v84 = vld [vmem:[#allocation5 + $0x118] sm:$0x1]
    %v85 = vld [vmem:[#allocation5 + $0x119] sm:$0x1]
    %v86 = vld [vmem:[#allocation5 + $0x120] sm:$0x3]
    %v87 = vld [vmem:[#allocation5 + $0x128] sm:$0x3]
    %v88 = vlaneseq
    %v89 = vshrl.u32 %v88, 7
    %v90 = vsub.s32 0, %v89
    %v91 = vrot.slane %v76, %v90
    %vm92 = vcmask 130048
    %v94 = vsel %vm92, %v40, 0
    %v97 = vsel %vm92, %v41, 0
    %99 = vmatprep.subr.mxu0 0.0
    %100 = vmatpush1.msra.mxu0 0.0
    %101 = vmatprep.subr.mxu0 0.0
    %102 = vmatpush1.msra.mxu0 0.0
    %103 = vmatprep.subr.mxu0 0.0
    %104 = vmatpush1.msra.mxu0 0.0
    %105 = vmatprep.subr.mxu0 0.0
    %106 = vmatpush1.msra.mxu0 0.0
    %107 = vmatprep.subr.mxu0 0.0
    %108 = vmatpush1.msra.mxu0 0.0
    %109 = vmatprep.subr.mxu0 0.0
    %110 = vmatpush1.msra.mxu0 0.0
    %111 = vmatprep.subr.mxu0 0.0
    %112 = vmatpush1.msra.mxu0 0.0
    %113 = vmatprep.subr.mxu0 0.0
    %114 = vmatpush1.msra.mxu0 0.0
    %115 = vmatprep.subr.mxu0 0.0
    %116 = vmatpush1.msra.mxu0 0.0
    %117 = vmatprep.subr.mxu0 0.0
    %118 = vmatpush1.msra.mxu0 0.0
    %119 = vmatprep.subr.mxu0 0.0
    %120 = vmatpush1.msra.mxu0 0.0
    %121 = vmatprep.subr.mxu0 0.0
    %122 = vmatpush1.msra.mxu0 0.0
    %123 = vmatprep.subr.mxu0 0.0
    %124 = vmatpush1.msra.mxu0 0.0
    %125 = vmatprep.subr.mxu0 0.0
    %126 = vmatpush1.msra.mxu0 0.0
    %127 = vmatprep.subr.mxu0 0.0
    %128 = vmatpush1.msra.mxu0 %v43
    %129 = vmatprep.subr.mxu0 0.0
    %130 = vmatpush1.msra.mxu0 %v42
    %131 = vmatprep.subr.mxu0 0.0
    %132 = vmatpush2.msra.mxu0 0.0
    %133 = vmatprep.subr.mxu0 0.0
    %134 = vmatpush2.msra.mxu0 0.0
    %135 = vmatprep.subr.mxu0 0.0
    %136 = vmatpush2.msra.mxu0 0.0
    %137 = vmatprep.subr.mxu0 0.0
    %138 = vmatpush2.msra.mxu0 0.0
    %139 = vmatprep.subr.mxu0 0.0
    %140 = vmatpush2.msra.mxu0 0.0
    %141 = vmatprep.subr.mxu0 0.0
    %142 = vmatpush2.msra.mxu0 0.0
    %143 = vmatprep.subr.mxu0 0.0
    %144 = vmatpush2.msra.mxu0 0.0
    %145 = vmatprep.subr.mxu0 0.0
    %146 = vmatpush2.msra.mxu0 0.0
    %147 = vmatprep.subr.mxu0 0.0
    %148 = vmatpush2.msra.mxu0 0.0
    %149 = vmatprep.subr.mxu0 0.0
    %150 = vmatpush2.msra.mxu0 0.0
    %151 = vmatprep.subr.mxu0 0.0
    %152 = vmatpush2.msra.mxu0 0.0
    %153 = vmatprep.subr.mxu0 0.0
    %154 = vmatpush2.msra.mxu0 0.0
    %155 = vmatprep.subr.mxu0 0.0
    %156 = vmatpush2.msra.mxu0 0.0
    %157 = vmatprep.subr.mxu0 0.0
    %158 = vmatpush2.msra.mxu0 0.0
    %159 = vmatprep.subr.mxu0 0.0
    %160 = vmatpush2.msra.mxu0 0.0
    %161 = vmatprep.subr.mxu0 0.0
    %162 = vmatpush2.msra.mxu0 0.0
    %163 = vmatprep.mubr.f32.mxu0 0.0
    %164 = vmatmul.mubr.f32.gmra.mxu0 %v94
    %v165 = vpop.f32.mrf.mxu0
    %v166 = vadd.f32 %v91, %v165
    %v167 = vpop.f32.mrf.mxu0
    %168 = vmatprep.mubr.f32.mxu0 0.0
    %169 = vmatmul.mubr.f32.gmra.mxu0 %v97
    %v170 = vpop.f32.mrf.mxu0
    %v171 = vadd.f32 %v91, %v170
    %v172 = vpop.f32.mrf.mxu0
    %173 = vdwg.mxu0
    %vm174 = vcmask 261120
    %v175 = vsel %vm174, %v166, 0.0
    %176 = vadd.xlane.f32.xlu0 %v175
    %v177 = vpop.xlane.xlu0 %176
    %v178 = vsel %vm174, %v171, 0.0
    %179 = vadd.xlane.f32.xlu0 %v178
    %v180 = vpop.xlane.xlu0 %179
    %v181 = vrcp.pop 32.0
    %v182 = vmul.f32 %v177, %v181
    %v183 = vmul.f32 %v180, %v181
    %v184 = vmul.f32 %v166, %v166
    %v185 = vmul.f32 %v171, %v171
    %v186 = vsel %vm174, %v184, 0.0
    %187 = vadd.xlane.f32.xlu0 %v186
    %v188 = vpop.xlane.xlu0 %187
    %v189 = vsel %vm174, %v185, 0.0
    %190 = vadd.xlane.f32.xlu0 %v189
    %v191 = vpop.xlane.xlu0 %190
    %v192 = vmul.f32 %v188, %v181
    %v193 = vmul.f32 %v191, %v181
    %v194 = vmul.f32 %v182, %v182
    %v195 = vmul.f32 %v183, %v183
    %v196 = vsub.f32 %v192, %v194
    %v197 = vsub.f32 %v193, %v195
    %v198 = vsub.f32 %v166, %v182
    %v199 = vsub.f32 %v171, %v183
    %v200 = vadd.f32 %v196, 1e-05
    %v201 = vadd.f32 %v197, 1e-05
    %v202 = vrsqrt.pop %v200
    %v203 = vrsqrt.pop %v201
    %v204 = vmul.f32 %v198, %v202
    %v205 = vmul.f32 %v199, %v203
    %v206 = vlaneseq
    %v207 = vshrl.u32 %v206, 7
    %v208 = vsub.s32 0, %v207
    %v209 = vrot.slane %v77, %v208
    %v210 = vmul.f32 %v204, %v209
    %v211 = vmul.f32 %v205, %v209
    %v212 = vlaneseq
    %v213 = vshrl.u32 %v212, 7
    %v214 = vsub.s32 0, %v213
    %v215 = vrot.slane %v78, %v214
    %v216 = vadd.f32 %v210, %v215
    %v217 = vadd.f32 %v211, %v215
    %v219 = vsel %vm174, %v216, 0
    %v222 = vsel %vm174, %v217, 0
    %224 = vmatprep.subr.mxu0 0.0
    %225 = vmatpush1.msra.mxu0 0.0
    %226 = vmatprep.subr.mxu0 0.0
    %227 = vmatpush1.msra.mxu0 0.0
    %228 = vmatprep.subr.mxu0 0.0
    %229 = vmatpush1.msra.mxu0 0.0
    %230 = vmatprep.subr.mxu0 0.0
    %231 = vmatpush1.msra.mxu0 0.0
    %232 = vmatprep.subr.mxu0 0.0
    %233 = vmatpush1.msra.mxu0 0.0
    %234 = vmatprep.subr.mxu0 0.0
    %235 = vmatpush1.msra.mxu0 0.0
    %236 = vmatprep.subr.mxu0 0.0
    %237 = vmatpush1.msra.mxu0 0.0
    %238 = vmatprep.subr.mxu0 0.0
    %239 = vmatpush1.msra.mxu0 0.0
    %240 = vmatprep.subr.mxu0 0.0
    %241 = vmatpush1.msra.mxu0 0.0
    %242 = vmatprep.subr.mxu0 0.0
    %243 = vmatpush1.msra.mxu0 0.0
    %244 = vmatprep.subr.mxu0 0.0
    %245 = vmatpush1.msra.mxu0 0.0
    %246 = vmatprep.subr.mxu0 0.0
    %247 = vmatpush1.msra.mxu0 0.0
    %248 = vmatprep.subr.mxu0 0.0
    %249 = vmatpush1.msra.mxu0 %v51
    %250 = vmatprep.subr.mxu0 0.0
    %251 = vmatpush1.msra.mxu0 %v50
    %252 = vmatprep.subr.mxu0 0.0
    %253 = vmatpush1.msra.mxu0 %v49
    %254 = vmatprep.subr.mxu0 0.0
    %255 = vmatpush1.msra.mxu0 %v48
    %256 = vmatprep.subr.mxu0 0.0
    %257 = vmatpush2.msra.mxu0 0.0
    %258 = vmatprep.subr.mxu0 0.0
    %259 = vmatpush2.msra.mxu0 0.0
    %260 = vmatprep.subr.mxu0 0.0
    %261 = vmatpush2.msra.mxu0 0.0
    %262 = vmatprep.subr.mxu0 0.0
    %263 = vmatpush2.msra.mxu0 0.0
    %264 = vmatprep.subr.mxu0 0.0
    %265 = vmatpush2.msra.mxu0 0.0
    %266 = vmatprep.subr.mxu0 0.0
    %267 = vmatpush2.msra.mxu0 0.0
    %268 = vmatprep.subr.mxu0 0.0
    %269 = vmatpush2.msra.mxu0 0.0
    %270 = vmatprep.subr.mxu0 0.0
    %271 = vmatpush2.msra.mxu0 0.0
    %272 = vmatprep.subr.mxu0 0.0
    %273 = vmatpush2.msra.mxu0 0.0
    %274 = vmatprep.subr.mxu0 0.0
    %275 = vmatpush2.msra.mxu0 0.0
    %276 = vmatprep.subr.mxu0 0.0
    %277 = vmatpush2.msra.mxu0 0.0
    %278 = vmatprep.subr.mxu0 0.0
    %279 = vmatpush2.msra.mxu0 0.0
    %280 = vmatprep.subr.mxu0 0.0
    %281 = vmatpush2.msra.mxu0 0.0
    %282 = vmatprep.subr.mxu0 0.0
    %283 = vmatpush2.msra.mxu0 0.0
    %284 = vmatprep.subr.mxu0 0.0
    %285 = vmatpush2.msra.mxu0 0.0
    %286 = vmatprep.subr.mxu0 0.0
    %287 = vmatpush2.msra.mxu0 0.0
    %288 = vmatprep.mubr.f32.mxu0 0.0
    %289 = vmatmul.mubr.f32.gmra.mxu0 %v219
    %v290 = vpop.f32.mrf.mxu0
    %v291 = vadd.f32 0.0, %v290
    %v292 = vpop.f32.mrf.mxu0
    %293 = vmatprep.mubr.f32.mxu0 0.0
    %294 = vmatmul.mubr.f32.gmra.mxu0 %v222
    %v295 = vpop.f32.mrf.mxu0
    %v296 = vadd.f32 0.0, %v295
    %v297 = vpop.f32.mrf.mxu0
    %298 = vdwg.mxu0
    %299 = vmatprep.subr.mxu0 0.0
    %300 = vmatpush1.msra.mxu0 0.0
    %301 = vmatprep.subr.mxu0 0.0
    %302 = vmatpush1.msra.mxu0 0.0
    %303 = vmatprep.subr.mxu0 0.0
    %304 = vmatpush1.msra.mxu0 0.0
    %305 = vmatprep.subr.mxu0 0.0
    %306 = vmatpush1.msra.mxu0 0.0
    %307 = vmatprep.subr.mxu0 0.0
    %308 = vmatpush1.msra.mxu0 0.0
    %309 = vmatprep.subr.mxu0 0.0
    %310 = vmatpush1.msra.mxu0 0.0
    %311 = vmatprep.subr.mxu0 0.0
    %312 = vmatpush1.msra.mxu0 0.0
    %313 = vmatprep.subr.mxu0 0.0
    %314 = vmatpush1.msra.mxu0 0.0
    %315 = vmatprep.subr.mxu0 0.0
    %316 = vmatpush1.msra.mxu0 0.0
    %317 = vmatprep.subr.mxu0 0.0
    %318 = vmatpush1.msra.mxu0 0.0
    %319 = vmatprep.subr.mxu0 0.0
    %320 = vmatpush1.msra.mxu0 0.0
    %321 = vmatprep.subr.mxu0 0.0
    %322 = vmatpush1.msra.mxu0 0.0
    %323 = vmatprep.subr.mxu0 0.0
    %324 = vmatpush1.msra.mxu0 %v55
    %325 = vmatprep.subr.mxu0 0.0
    %326 = vmatpush1.msra.mxu0 %v54
    %327 = vmatprep.subr.mxu0 0.0
    %328 = vmatpush1.msra.mxu0 %v53
    %329 = vmatprep.subr.mxu0 0.0
    %330 = vmatpush1.msra.mxu0 %v52
    %331 = vmatprep.subr.mxu0 0.0
    %332 = vmatpush2.msra.mxu0 0.0
    %333 = vmatprep.subr.mxu0 0.0
    %334 = vmatpush2.msra.mxu0 0.0
    %335 = vmatprep.subr.mxu0 0.0
    %336 = vmatpush2.msra.mxu0 0.0
    %337 = vmatprep.subr.mxu0 0.0
    %338 = vmatpush2.msra.mxu0 0.0
    %339 = vmatprep.subr.mxu0 0.0
    %340 = vmatpush2.msra.mxu0 0.0
    %341 = vmatprep.subr.mxu0 0.0
    %342 = vmatpush2.msra.mxu0 0.0
    %343 = vmatprep.subr.mxu0 0.0
    %344 = vmatpush2.msra.mxu0 0.0
    %345 = vmatprep.subr.mxu0 0.0
    %346 = vmatpush2.msra.mxu0 0.0
    %347 = vmatprep.subr.mxu0 0.0
    %348 = vmatpush2.msra.mxu0 0.0
    %349 = vmatprep.subr.mxu0 0.0
    %350 = vmatpush2.msra.mxu0 0.0
    %351 = vmatprep.subr.mxu0 0.0
    %352 = vmatpush2.msra.mxu0 0.0
    %353 = vmatprep.subr.mxu0 0.0
    %354 = vmatpush2.msra.mxu0 0.0
    %355 = vmatprep.subr.mxu0 0.0
    %356 = vmatpush2.msra.mxu0 0.0
    %357 = vmatprep.subr.mxu0 0.0
    %358 = vmatpush2.msra.mxu0 0.0
    %359 = vmatprep.subr.mxu0 0.0
    %360 = vmatpush2.msra.mxu0 0.0
    %361 = vmatprep.subr.mxu0 0.0
    %362 = vmatpush2.msra.mxu0 0.0
    %363 = vmatprep.mubr.f32.mxu0 0.0
    %364 = vmatmul.mubr.f32.gmra.mxu0 %v219
    %v365 = vpop.f32.mrf.mxu0
    %v366 = vadd.f32 0.0, %v365
    %v367 = vpop.f32.mrf.mxu0
    %368 = vmatprep.mubr.f32.mxu0 0.0
    %369 = vmatmul.mubr.f32.gmra.mxu0 %v222
    %v370 = vpop.f32.mrf.mxu0
    %v371 = vadd.f32 0.0, %v370
    %v372 = vpop.f32.mrf.mxu0
    %373 = vdwg.mxu0
    %v375 = vsel %vm92, %v86, 0
    %377 = vmatprep.subr.mxu0 0.0
    %378 = vmatpush1.msra.mxu0 0.0
    %379 = vmatprep.subr.mxu0 0.0
    %380 = vmatpush1.msra.mxu0 0.0
    %381 = vmatprep.subr.mxu0 0.0
    %382 = vmatpush1.msra.mxu0 0.0
    %383 = vmatprep.subr.mxu0 0.0
    %384 = vmatpush1.msra.mxu0 0.0
    %385 = vmatprep.subr.mxu0 0.0
    %386 = vmatpush1.msra.mxu0 0.0
    %387 = vmatprep.subr.mxu0 0.0
    %388 = vmatpush1.msra.mxu0 0.0
    %389 = vmatprep.subr.mxu0 0.0
    %390 = vmatpush1.msra.mxu0 0.0
    %391 = vmatprep.subr.mxu0 0.0
    %392 = vmatpush1.msra.mxu0 0.0
    %393 = vmatprep.subr.mxu0 0.0
    %394 = vmatpush1.msra.mxu0 0.0
    %395 = vmatprep.subr.mxu0 0.0
    %396 = vmatpush1.msra.mxu0 0.0
    %397 = vmatprep.subr.mxu0 0.0
    %398 = vmatpush1.msra.mxu0 0.0
    %399 = vmatprep.subr.mxu0 0.0
    %400 = vmatpush1.msra.mxu0 0.0
    %401 = vmatprep.subr.mxu0 0.0
    %402 = vmatpush1.msra.mxu0 0.0
    %403 = vmatprep.subr.mxu0 0.0
    %404 = vmatpush1.msra.mxu0 0.0
    %405 = vmatprep.subr.mxu0 0.0
    %406 = vmatpush1.msra.mxu0 %v217
    %407 = vmatprep.subr.mxu0 0.0
    %408 = vmatpush1.msra.mxu0 %v216
    %409 = vmatprep.subr.mxu0 0.0
    %410 = vmatpush2.msra.mxu0 0.0
    %411 = vmatprep.subr.mxu0 0.0
    %412 = vmatpush2.msra.mxu0 0.0
    %413 = vmatprep.subr.mxu0 0.0
    %414 = vmatpush2.msra.mxu0 0.0
    %415 = vmatprep.subr.mxu0 0.0
    %416 = vmatpush2.msra.mxu0 0.0
    %417 = vmatprep.subr.mxu0 0.0
    %418 = vmatpush2.msra.mxu0 0.0
    %419 = vmatprep.subr.mxu0 0.0
    %420 = vmatpush2.msra.mxu0 0.0
    %421 = vmatprep.subr.mxu0 0.0
    %422 = vmatpush2.msra.mxu0 0.0
    %423 = vmatprep.subr.mxu0 0.0
    %424 = vmatpush2.msra.mxu0 0.0
    %425 = vmatprep.subr.mxu0 0.0
    %426 = vmatpush2.msra.mxu0 0.0
    %427 = vmatprep.subr.mxu0 0.0
    %428 = vmatpush2.msra.mxu0 0.0
    %429 = vmatprep.subr.mxu0 0.0
    %430 = vmatpush2.msra.mxu0 0.0
    %431 = vmatprep.subr.mxu0 0.0
    %432 = vmatpush2.msra.mxu0 0.0
    %433 = vmatprep.subr.mxu0 0.0
    %434 = vmatpush2.msra.mxu0 0.0
    %435 = vmatprep.subr.mxu0 0.0
    %436 = vmatpush2.msra.mxu0 0.0
    %437 = vmatprep.subr.mxu0 0.0
    %438 = vmatpush2.msra.mxu0 0.0
    %439 = vmatprep.subr.mxu0 0.0
    %440 = vmatpush2.msra.mxu0 0.0
    %441 = vmatprep.mubr.f32.mxu0 0.0
    %442 = vmatmul.mubr.f32.gmra.mxu0 %v375
    %v443 = vpop.f32.mrf.mxu0
    %v444 = vadd.f32 0.0, %v443
    %v445 = vpop.f32.mrf.mxu0
    %446 = vdwg.mxu0
    %v448 = vsel %vm174, %v444, 0
    %450 = vmatprep.subr.mxu0 0.0
    %451 = vmatpush1.msra.mxu0 0.0
    %452 = vmatprep.subr.mxu0 0.0
    %453 = vmatpush1.msra.mxu0 0.0
    %454 = vmatprep.subr.mxu0 0.0
    %455 = vmatpush1.msra.mxu0 0.0
    %456 = vmatprep.subr.mxu0 0.0
    %457 = vmatpush1.msra.mxu0 0.0
    %458 = vmatprep.subr.mxu0 0.0
    %459 = vmatpush1.msra.mxu0 0.0
    %460 = vmatprep.subr.mxu0 0.0
    %461 = vmatpush1.msra.mxu0 0.0
    %462 = vmatprep.subr.mxu0 0.0
    %463 = vmatpush1.msra.mxu0 0.0
    %464 = vmatprep.subr.mxu0 0.0
    %465 = vmatpush1.msra.mxu0 0.0
    %466 = vmatprep.subr.mxu0 0.0
    %467 = vmatpush1.msra.mxu0 0.0
    %468 = vmatprep.subr.mxu0 0.0
    %469 = vmatpush1.msra.mxu0 0.0
    %470 = vmatprep.subr.mxu0 0.0
    %471 = vmatpush1.msra.mxu0 0.0
    %472 = vmatprep.subr.mxu0 0.0
    %473 = vmatpush1.msra.mxu0 0.0
    %474 = vmatprep.subr.mxu0 0.0
    %475 = vmatpush1.msra.mxu0 %v47
    %476 = vmatprep.subr.mxu0 0.0
    %477 = vmatpush1.msra.mxu0 %v46
    %478 = vmatprep.subr.mxu0 0.0
    %479 = vmatpush1.msra.mxu0 %v45
    %480 = vmatprep.subr.mxu0 0.0
    %481 = vmatpush1.msra.mxu0 %v44
    %482 = vmatprep.subr.mxu0 0.0
    %483 = vmatpush2.msra.mxu0 0.0
    %484 = vmatprep.subr.mxu0 0.0
    %485 = vmatpush2.msra.mxu0 0.0
    %486 = vmatprep.subr.mxu0 0.0
    %487 = vmatpush2.msra.mxu0 0.0
    %488 = vmatprep.subr.mxu0 0.0
    %489 = vmatpush2.msra.mxu0 0.0
    %490 = vmatprep.subr.mxu0 0.0
    %491 = vmatpush2.msra.mxu0 0.0
    %492 = vmatprep.subr.mxu0 0.0
    %493 = vmatpush2.msra.mxu0 0.0
    %494 = vmatprep.subr.mxu0 0.0
    %495 = vmatpush2.msra.mxu0 0.0
    %496 = vmatprep.subr.mxu0 0.0
    %497 = vmatpush2.msra.mxu0 0.0
    %498 = vmatprep.subr.mxu0 0.0
    %499 = vmatpush2.msra.mxu0 0.0
    %500 = vmatprep.subr.mxu0 0.0
    %501 = vmatpush2.msra.mxu0 0.0
    %502 = vmatprep.subr.mxu0 0.0
    %503 = vmatpush2.msra.mxu0 0.0
    %504 = vmatprep.subr.mxu0 0.0
    %505 = vmatpush2.msra.mxu0 0.0
    %506 = vmatprep.subr.mxu0 0.0
    %507 = vmatpush2.msra.mxu0 0.0
    %508 = vmatprep.subr.mxu0 0.0
    %509 = vmatpush2.msra.mxu0 0.0
    %510 = vmatprep.subr.mxu0 0.0
    %511 = vmatpush2.msra.mxu0 0.0
    %512 = vmatprep.subr.mxu0 0.0
    %513 = vmatpush2.msra.mxu0 0.0
    %514 = vmatprep.mubr.f32.mxu0 0.0
    %515 = vmatmul.mubr.f32.gmra.mxu0 %v448
    %v516 = vpop.f32.mrf.mxu0
    %v517 = vadd.f32 0.0, %v516
    %v518 = vpop.f32.mrf.mxu0
    %519 = vdwg.mxu0
    %v521 = vsel %vm174, %v517, 0
    %v524 = vsel %vm174, %v291, 0
    %v527 = vsel %vm174, %v296, 0
    %529 = vmatprep.subr.mxu0 0.0
    %530 = vmatpush1.xpose.msra.mxu0 0.0
    %531 = vmatprep.subr.mxu0 0.0
    %532 = vmatpush1.xpose.msra.mxu0 0.0
    %533 = vmatprep.subr.mxu0 0.0
    %534 = vmatpush1.xpose.msra.mxu0 0.0
    %535 = vmatprep.subr.mxu0 0.0
    %536 = vmatpush1.xpose.msra.mxu0 0.0
    %537 = vmatprep.subr.mxu0 0.0
    %538 = vmatpush1.xpose.msra.mxu0 0.0
    %539 = vmatprep.subr.mxu0 0.0
    %540 = vmatpush1.xpose.msra.mxu0 0.0
    %541 = vmatprep.subr.mxu0 0.0
    %542 = vmatpush1.xpose.msra.mxu0 0.0
    %543 = vmatprep.subr.mxu0 0.0
    %544 = vmatpush1.xpose.msra.mxu0 0.0
    %545 = vmatprep.subr.mxu0 0.0
    %546 = vmatpush1.xpose.msra.mxu0 0.0
    %547 = vmatprep.subr.mxu0 0.0
    %548 = vmatpush1.xpose.msra.mxu0 0.0
    %549 = vmatprep.subr.mxu0 0.0
    %550 = vmatpush1.xpose.msra.mxu0 0.0
    %551 = vmatprep.subr.mxu0 0.0
    %552 = vmatpush1.xpose.msra.mxu0 0.0
    %553 = vmatprep.subr.mxu0 0.0
    %554 = vmatpush1.xpose.msra.mxu0 0.0
    %555 = vmatprep.subr.mxu0 0.0
    %556 = vmatpush1.xpose.msra.mxu0 0.0
    %557 = vmatprep.subr.mxu0 0.0
    %558 = vmatpush1.xpose.msra.mxu0 %v527
    %559 = vmatprep.subr.mxu0 0.0
    %560 = vmatpush1.xpose.msra.mxu0 %v524
    %561 = vmatprep.subr.mxu0 0.0
    %562 = vmatpush2.xpose.msra.mxu0 0.0
    %563 = vmatprep.subr.mxu0 0.0
    %564 = vmatpush2.xpose.msra.mxu0 0.0
    %565 = vmatprep.subr.mxu0 0.0
    %566 = vmatpush2.xpose.msra.mxu0 0.0
    %567 = vmatprep.subr.mxu0 0.0
    %568 = vmatpush2.xpose.msra.mxu0 0.0
    %569 = vmatprep.subr.mxu0 0.0
    %570 = vmatpush2.xpose.msra.mxu0 0.0
    %571 = vmatprep.subr.mxu0 0.0
    %572 = vmatpush2.xpose.msra.mxu0 0.0
    %573 = vmatprep.subr.mxu0 0.0
    %574 = vmatpush2.xpose.msra.mxu0 0.0
    %575 = vmatprep.subr.mxu0 0.0
    %576 = vmatpush2.xpose.msra.mxu0 0.0
    %577 = vmatprep.subr.mxu0 0.0
    %578 = vmatpush2.xpose.msra.mxu0 0.0
    %579 = vmatprep.subr.mxu0 0.0
    %580 = vmatpush2.xpose.msra.mxu0 0.0
    %581 = vmatprep.subr.mxu0 0.0
    %582 = vmatpush2.xpose.msra.mxu0 0.0
    %583 = vmatprep.subr.mxu0 0.0
    %584 = vmatpush2.xpose.msra.mxu0 0.0
    %585 = vmatprep.subr.mxu0 0.0
    %586 = vmatpush2.xpose.msra.mxu0 0.0
    %587 = vmatprep.subr.mxu0 0.0
    %588 = vmatpush2.xpose.msra.mxu0 0.0
    %589 = vmatprep.subr.mxu0 0.0
    %590 = vmatpush2.xpose.msra.mxu0 0.0
    %591 = vmatprep.subr.mxu0 0.0
    %592 = vmatpush2.xpose.msra.mxu0 0.0
    %593 = vmatprep.mubr.f32.mxu0 0.0
    %594 = vmatmul.mubr.f32.gmra.mxu0 %v521
    %v595 = vpop.f32.mrf.mxu0
    %v596 = vadd.f32 0.0, %v595
    %v597 = vpop.f32.mrf.mxu0
    %598 = vdwg.mxu0
    %v599 = vmul.f32 %v596, 0.17677669
    %v600 = vadd.f32 %v599, %v87
    %v601 = vmul.f32 %v600, 1.442695
    %v602 = vpow.pop %v601
    %vm603 = vcmask 123904
    %v604 = vsel %vm603, %v602, 0.0
    %605 = vadd.xlane.f32.xlu0 %v604
    %v606 = vpop.xlane.xlu0 %605
    %v607 = vrcp.pop %v606
    %v608 = vmul.f32 %v602, %v607
    %v610 = vsel %vm92, %v608, 0
    %612 = vmatprep.subr.mxu0 0.0
    %613 = vmatpush1.msra.mxu0 0.0
    %614 = vmatprep.subr.mxu0 0.0
    %615 = vmatpush1.msra.mxu0 0.0
    %616 = vmatprep.subr.mxu0 0.0
    %617 = vmatpush1.msra.mxu0 0.0
    %618 = vmatprep.subr.mxu0 0.0
    %619 = vmatpush1.msra.mxu0 0.0
    %620 = vmatprep.subr.mxu0 0.0
    %621 = vmatpush1.msra.mxu0 0.0
    %622 = vmatprep.subr.mxu0 0.0
    %623 = vmatpush1.msra.mxu0 0.0
    %624 = vmatprep.subr.mxu0 0.0
    %625 = vmatpush1.msra.mxu0 0.0
    %626 = vmatprep.subr.mxu0 0.0
    %627 = vmatpush1.msra.mxu0 0.0
    %628 = vmatprep.subr.mxu0 0.0
    %629 = vmatpush1.msra.mxu0 0.0
    %630 = vmatprep.subr.mxu0 0.0
    %631 = vmatpush1.msra.mxu0 0.0
    %632 = vmatprep.subr.mxu0 0.0
    %633 = vmatpush1.msra.mxu0 0.0
    %634 = vmatprep.subr.mxu0 0.0
    %635 = vmatpush1.msra.mxu0 0.0
    %636 = vmatprep.subr.mxu0 0.0
    %637 = vmatpush1.msra.mxu0 0.0
    %638 = vmatprep.subr.mxu0 0.0
    %639 = vmatpush1.msra.mxu0 0.0
    %640 = vmatprep.subr.mxu0 0.0
    %641 = vmatpush1.msra.mxu0 %v371
    %642 = vmatprep.subr.mxu0 0.0
    %643 = vmatpush1.msra.mxu0 %v366
    %644 = vmatprep.subr.mxu0 0.0
    %645 = vmatpush2.msra.mxu0 0.0
    %646 = vmatprep.subr.mxu0 0.0
    %647 = vmatpush2.msra.mxu0 0.0
    %648 = vmatprep.subr.mxu0 0.0
    %649 = vmatpush2.msra.mxu0 0.0
    %650 = vmatprep.subr.mxu0 0.0
    %651 = vmatpush2.msra.mxu0 0.0
    %652 = vmatprep.subr.mxu0 0.0
    %653 = vmatpush2.msra.mxu0 0.0
    %654 = vmatprep.subr.mxu0 0.0
    %655 = vmatpush2.msra.mxu0 0.0
    %656 = vmatprep.subr.mxu0 0.0
    %657 = vmatpush2.msra.mxu0 0.0
    %658 = vmatprep.subr.mxu0 0.0
    %659 = vmatpush2.msra.mxu0 0.0
    %660 = vmatprep.subr.mxu0 0.0
    %661 = vmatpush2.msra.mxu0 0.0
    %662 = vmatprep.subr.mxu0 0.0
    %663 = vmatpush2.msra.mxu0 0.0
    %664 = vmatprep.subr.mxu0 0.0
    %665 = vmatpush2.msra.mxu0 0.0
    %666 = vmatprep.subr.mxu0 0.0
    %667 = vmatpush2.msra.mxu0 0.0
    %668 = vmatprep.subr.mxu0 0.0
    %669 = vmatpush2.msra.mxu0 0.0
    %670 = vmatprep.subr.mxu0 0.0
    %671 = vmatpush2.msra.mxu0 0.0
    %672 = vmatprep.subr.mxu0 0.0
    %673 = vmatpush2.msra.mxu0 0.0
    %674 = vmatprep.subr.mxu0 0.0
    %675 = vmatpush2.msra.mxu0 0.0
    %676 = vmatprep.mubr.f32.mxu0 0.0
    %677 = vmatmul.mubr.f32.gmra.mxu0 %v610
    %v678 = vpop.f32.mrf.mxu0
    %v679 = vadd.f32 0.0, %v678
    %v680 = vpop.f32.mrf.mxu0
    %681 = vdwg.mxu0
    %v683 = vsel %vm174, %v679, 0
    %685 = vmatprep.subr.mxu0 0.0
    %686 = vmatpush1.msra.mxu0 0.0
    %687 = vmatprep.subr.mxu0 0.0
    %688 = vmatpush1.msra.mxu0 0.0
    %689 = vmatprep.subr.mxu0 0.0
    %690 = vmatpush1.msra.mxu0 0.0
    %691 = vmatprep.subr.mxu0 0.0
    %692 = vmatpush1.msra.mxu0 0.0
    %693 = vmatprep.subr.mxu0 0.0
    %694 = vmatpush1.msra.mxu0 0.0
    %695 = vmatprep.subr.mxu0 0.0
    %696 = vmatpush1.msra.mxu0 0.0
    %697 = vmatprep.subr.mxu0 0.0
    %698 = vmatpush1.msra.mxu0 0.0
    %699 = vmatprep.subr.mxu0 0.0
    %700 = vmatpush1.msra.mxu0 0.0
    %701 = vmatprep.subr.mxu0 0.0
    %702 = vmatpush1.msra.mxu0 0.0
    %703 = vmatprep.subr.mxu0 0.0
    %704 = vmatpush1.msra.mxu0 0.0
    %705 = vmatprep.subr.mxu0 0.0
    %706 = vmatpush1.msra.mxu0 0.0
    %707 = vmatprep.subr.mxu0 0.0
    %708 = vmatpush1.msra.mxu0 0.0
    %709 = vmatprep.subr.mxu0 0.0
    %710 = vmatpush1.msra.mxu0 %v59
    %711 = vmatprep.subr.mxu0 0.0
    %712 = vmatpush1.msra.mxu0 %v58
    %713 = vmatprep.subr.mxu0 0.0
    %714 = vmatpush1.msra.mxu0 %v57
    %715 = vmatprep.subr.mxu0 0.0
    %716 = vmatpush1.msra.mxu0 %v56
    %717 = vmatprep.subr.mxu0 0.0
    %718 = vmatpush2.msra.mxu0 0.0
    %719 = vmatprep.subr.mxu0 0.0
    %720 = vmatpush2.msra.mxu0 0.0
    %721 = vmatprep.subr.mxu0 0.0
    %722 = vmatpush2.msra.mxu0 0.0
    %723 = vmatprep.subr.mxu0 0.0
    %724 = vmatpush2.msra.mxu0 0.0
    %725 = vmatprep.subr.mxu0 0.0
    %726 = vmatpush2.msra.mxu0 0.0
    %727 = vmatprep.subr.mxu0 0.0
    %728 = vmatpush2.msra.mxu0 0.0
    %729 = vmatprep.subr.mxu0 0.0
    %730 = vmatpush2.msra.mxu0 0.0
    %731 = vmatprep.subr.mxu0 0.0
    %732 = vmatpush2.msra.mxu0 0.0
    %733 = vmatprep.subr.mxu0 0.0
    %734 = vmatpush2.msra.mxu0 0.0
    %735 = vmatprep.subr.mxu0 0.0
    %736 = vmatpush2.msra.mxu0 0.0
    %737 = vmatprep.subr.mxu0 0.0
    %738 = vmatpush2.msra.mxu0 0.0
    %739 = vmatprep.subr.mxu0 0.0
    %740 = vmatpush2.msra.mxu0 0.0
    %741 = vmatprep.subr.mxu0 0.0
    %742 = vmatpush2.msra.mxu0 0.0
    %743 = vmatprep.subr.mxu0 0.0
    %744 = vmatpush2.msra.mxu0 0.0
    %745 = vmatprep.subr.mxu0 0.0
    %746 = vmatpush2.msra.mxu0 0.0
    %747 = vmatprep.subr.mxu0 0.0
    %748 = vmatpush2.msra.mxu0 0.0
    %749 = vmatprep.mubr.f32.mxu0 0.0
    %750 = vmatmul.mubr.f32.gmra.mxu0 %v683
    %v751 = vpop.f32.mrf.mxu0
    %v752 = vadd.f32 0.0, %v751
    %v753 = vpop.f32.mrf.mxu0
    %754 = vdwg.mxu0
    %755 = vmatprep.subr.mxu0 0.0
    %756 = vmatpush1.msra.mxu0 0.0
    %757 = vmatprep.subr.mxu0 0.0
    %758 = vmatpush1.msra.mxu0 0.0
    %759 = vmatprep.subr.mxu0 0.0
    %760 = vmatpush1.msra.mxu0 0.0
    %761 = vmatprep.subr.mxu0 0.0
    %762 = vmatpush1.msra.mxu0 0.0
    %763 = vmatprep.subr.mxu0 0.0
    %764 = vmatpush1.msra.mxu0 0.0
    %765 = vmatprep.subr.mxu0 0.0
    %766 = vmatpush1.msra.mxu0 0.0
    %767 = vmatprep.subr.mxu0 0.0
    %768 = vmatpush1.msra.mxu0 0.0
    %769 = vmatprep.subr.mxu0 0.0
    %770 = vmatpush1.msra.mxu0 0.0
    %771 = vmatprep.subr.mxu0 0.0
    %772 = vmatpush1.msra.mxu0 0.0
    %773 = vmatprep.subr.mxu0 0.0
    %774 = vmatpush1.msra.mxu0 0.0
    %775 = vmatprep.subr.mxu0 0.0
    %776 = vmatpush1.msra.mxu0 0.0
    %777 = vmatprep.subr.mxu0 0.0
    %778 = vmatpush1.msra.mxu0 0.0
    %779 = vmatprep.subr.mxu0 0.0
    %780 = vmatpush1.msra.mxu0 0.0
    %781 = vmatprep.subr.mxu0 0.0
    %782 = vmatpush1.msra.mxu0 0.0
    %783 = vmatprep.subr.mxu0 0.0
    %784 = vmatpush1.msra.mxu0 %v171
    %785 = vmatprep.subr.mxu0 0.0
    %786 = vmatpush1.msra.mxu0 %v166
    %787 = vmatprep.subr.mxu0 0.0
    %788 = vmatpush2.msra.mxu0 0.0
    %789 = vmatprep.subr.mxu0 0.0
    %790 = vmatpush2.msra.mxu0 0.0
    %791 = vmatprep.subr.mxu0 0.0
    %792 = vmatpush2.msra.mxu0 0.0
    %793 = vmatprep.subr.mxu0 0.0
    %794 = vmatpush2.msra.mxu0 0.0
    %795 = vmatprep.subr.mxu0 0.0
    %796 = vmatpush2.msra.mxu0 0.0
    %797 = vmatprep.subr.mxu0 0.0
    %798 = vmatpush2.msra.mxu0 0.0
    %799 = vmatprep.subr.mxu0 0.0
    %800 = vmatpush2.msra.mxu0 0.0
    %801 = vmatprep.subr.mxu0 0.0
    %802 = vmatpush2.msra.mxu0 0.0
    %803 = vmatprep.subr.mxu0 0.0
    %804 = vmatpush2.msra.mxu0 0.0
    %805 = vmatprep.subr.mxu0 0.0
    %806 = vmatpush2.msra.mxu0 0.0
    %807 = vmatprep.subr.mxu0 0.0
    %808 = vmatpush2.msra.mxu0 0.0
    %809 = vmatprep.subr.mxu0 0.0
    %810 = vmatpush2.msra.mxu0 0.0
    %811 = vmatprep.subr.mxu0 0.0
    %812 = vmatpush2.msra.mxu0 0.0
    %813 = vmatprep.subr.mxu0 0.0
    %814 = vmatpush2.msra.mxu0 0.0
    %815 = vmatprep.subr.mxu0 0.0
    %816 = vmatpush2.msra.mxu0 0.0
    %817 = vmatprep.subr.mxu0 0.0
    %818 = vmatpush2.msra.mxu0 0.0
    %819 = vmatprep.mubr.f32.mxu0 0.0
    %820 = vmatmul.mubr.f32.gmra.mxu0 %v375
    %v821 = vpop.f32.mrf.mxu0
    %v822 = vadd.f32 %v752, %v821
    %v823 = vpop.f32.mrf.mxu0
    %824 = vdwg.mxu0
    %vm825 = vcmask 254976
    %v826 = vsel %vm825, %v822, 0.0
    %827 = vadd.xlane.f32.xlu0 %v826
    %v828 = vpop.xlane.xlu0 %827
    %v829 = vmul.f32 %v828, %v181
    %v830 = vmul.f32 %v822, %v822
    %v831 = vsel %vm825, %v830, 0.0
    %832 = vadd.xlane.f32.xlu0 %v831
    %v833 = vpop.xlane.xlu0 %832
    %v834 = vmul.f32 %v833, %v181
    %v835 = vmul.f32 %v829, %v829
    %v836 = vsub.f32 %v834, %v835
    %v837 = vsub.f32 %v822, %v829
    %v838 = vadd.f32 %v836, 1e-05
    %v839 = vrsqrt.pop %v838
    %v840 = vmul.f32 %v837, %v839
    %v841 = vlaneseq
    %v842 = vshrl.u32 %v841, 7
    %v843 = vsub.s32 0, %v842
    %v844 = vrot.slane %v79, %v843
    %v845 = vmul.f32 %v840, %v844
    %v846 = vlaneseq
    %v847 = vshrl.u32 %v846, 7
    %v848 = vsub.s32 0, %v847
    %v849 = vrot.slane %v80, %v848
    %v850 = vadd.f32 %v845, %v849
    %v851 = vlaneseq
    %v852 = vshrl.u32 %v851, 7
    %v853 = vsub.s32 0, %v852
    %v854 = vrot.slane %v83, %v853
    %v856 = vsel %vm174, %v850, 0
    %858 = vmatprep.subr.mxu0 0.0
    %859 = vmatpush1.msra.mxu0 0.0
    %860 = vmatprep.subr.mxu0 0.0
    %861 = vmatpush1.msra.mxu0 0.0
    %862 = vmatprep.subr.mxu0 0.0
    %863 = vmatpush1.msra.mxu0 0.0
    %864 = vmatprep.subr.mxu0 0.0
    %865 = vmatpush1.msra.mxu0 0.0
    %866 = vmatprep.subr.mxu0 0.0
    %867 = vmatpush1.msra.mxu0 0.0
    %868 = vmatprep.subr.mxu0 0.0
    %869 = vmatpush1.msra.mxu0 0.0
    %870 = vmatprep.subr.mxu0 0.0
    %871 = vmatpush1.msra.mxu0 0.0
    %872 = vmatprep.subr.mxu0 0.0
    %873 = vmatpush1.msra.mxu0 0.0
    %874 = vmatprep.subr.mxu0 0.0
    %875 = vmatpush1.msra.mxu0 0.0
    %876 = vmatprep.subr.mxu0 0.0
    %877 = vmatpush1.msra.mxu0 0.0
    %878 = vmatprep.subr.mxu0 0.0
    %879 = vmatpush1.msra.mxu0 0.0
    %880 = vmatprep.subr.mxu0 0.0
    %881 = vmatpush1.msra.mxu0 0.0
    %882 = vmatprep.subr.mxu0 0.0
    %883 = vmatpush1.msra.mxu0 %v63
    %884 = vmatprep.subr.mxu0 0.0
    %885 = vmatpush1.msra.mxu0 %v62
    %886 = vmatprep.subr.mxu0 0.0
    %887 = vmatpush1.msra.mxu0 %v61
    %888 = vmatprep.subr.mxu0 0.0
    %889 = vmatpush1.msra.mxu0 %v60
    %890 = vmatprep.subr.mxu0 0.0
    %891 = vmatpush2.msra.mxu0 0.0
    %892 = vmatprep.subr.mxu0 0.0
    %893 = vmatpush2.msra.mxu0 0.0
    %894 = vmatprep.subr.mxu0 0.0
    %895 = vmatpush2.msra.mxu0 0.0
    %896 = vmatprep.subr.mxu0 0.0
    %897 = vmatpush2.msra.mxu0 0.0
    %898 = vmatprep.subr.mxu0 0.0
    %899 = vmatpush2.msra.mxu0 0.0
    %900 = vmatprep.subr.mxu0 0.0
    %901 = vmatpush2.msra.mxu0 0.0
    %902 = vmatprep.subr.mxu0 0.0
    %903 = vmatpush2.msra.mxu0 0.0
    %904 = vmatprep.subr.mxu0 0.0
    %905 = vmatpush2.msra.mxu0 0.0
    %906 = vmatprep.subr.mxu0 0.0
    %907 = vmatpush2.msra.mxu0 0.0
    %908 = vmatprep.subr.mxu0 0.0
    %909 = vmatpush2.msra.mxu0 0.0
    %910 = vmatprep.subr.mxu0 0.0
    %911 = vmatpush2.msra.mxu0 0.0
    %912 = vmatprep.subr.mxu0 0.0
    %913 = vmatpush2.msra.mxu0 0.0
    %914 = vmatprep.subr.mxu0 0.0
    %915 = vmatpush2.msra.mxu0 0.0
    %916 = vmatprep.subr.mxu0 0.0
    %917 = vmatpush2.msra.mxu0 0.0
    %918 = vmatprep.subr.mxu0 0.0
    %919 = vmatpush2.msra.mxu0 0.0
    %920 = vmatprep.subr.mxu0 0.0
    %921 = vmatpush2.msra.mxu0 0.0
    %922 = vmatprep.mubr.f32.mxu0 0.0
    %923 = vmatmul.mubr.f32.gmra.mxu0 %v856
    %v924 = vpop.f32.mrf.mxu0
    %v925 = vadd.f32 %v854, %v924
    %v926 = vpop.f32.mrf.mxu0
    %927 = vdwg.mxu0
    %v928 = vmul.f32 %v925, %v925
    %v929 = vmul.f32 %v925, %v928
    %v930 = vmul.f32 %v929, 0.044715
    %v931 = vadd.f32 %v925, %v930
    %v932 = vmul.f32 %v931, 0.7978846
    %v933 = vtanh.pop %v932
    %v934 = vadd.f32 %v933, 1.0
    %v935 = vmul.f32 %v934, 0.5
    %v936 = vmul.f32 %v925, %v935
    %v937 = vlaneseq
    %v938 = vshrl.u32 %v937, 7
    %v939 = vsub.s32 0, %v938
    %v940 = vrot.slane %v84, %v939
    %vm941 = vcmask 523264
    %v943 = vsel %vm941, %v936, 0
    %945 = vmatprep.subr.mxu0 0.0
    %946 = vmatpush1.msra.mxu0 0.0
    %947 = vmatprep.subr.mxu0 0.0
    %948 = vmatpush1.msra.mxu0 0.0
    %949 = vmatprep.subr.mxu0 0.0
    %950 = vmatpush1.msra.mxu0 0.0
    %951 = vmatprep.subr.mxu0 0.0
    %952 = vmatpush1.msra.mxu0 0.0
    %953 = vmatprep.subr.mxu0 0.0
    %954 = vmatpush1.msra.mxu0 0.0
    %955 = vmatprep.subr.mxu0 0.0
    %956 = vmatpush1.msra.mxu0 0.0
    %957 = vmatprep.subr.mxu0 0.0
    %958 = vmatpush1.msra.mxu0 0.0
    %959 = vmatprep.subr.mxu0 0.0
    %960 = vmatpush1.msra.mxu0 0.0
    %961 = vmatprep.subr.mxu0 0.0
    %962 = vmatpush1.msra.mxu0 %v71
    %963 = vmatprep.subr.mxu0 0.0
    %964 = vmatpush1.msra.mxu0 %v70
    %965 = vmatprep.subr.mxu0 0.0
    %966 = vmatpush1.msra.mxu0 %v69
    %967 = vmatprep.subr.mxu0 0.0
    %968 = vmatpush1.msra.mxu0 %v68
    %969 = vmatprep.subr.mxu0 0.0
    %970 = vmatpush1.msra.mxu0 %v67
    %971 = vmatprep.subr.mxu0 0.0
    %972 = vmatpush1.msra.mxu0 %v66
    %973 = vmatprep.subr.mxu0 0.0
    %974 = vmatpush1.msra.mxu0 %v65
    %975 = vmatprep.subr.mxu0 0.0
    %976 = vmatpush1.msra.mxu0 %v64
    %977 = vmatprep.subr.mxu0 0.0
    %978 = vmatpush2.msra.mxu0 0.0
    %979 = vmatprep.subr.mxu0 0.0
    %980 = vmatpush2.msra.mxu0 0.0
    %981 = vmatprep.subr.mxu0 0.0
    %982 = vmatpush2.msra.mxu0 0.0
    %983 = vmatprep.subr.mxu0 0.0
    %984 = vmatpush2.msra.mxu0 0.0
    %985 = vmatprep.subr.mxu0 0.0
    %986 = vmatpush2.msra.mxu0 0.0
    %987 = vmatprep.subr.mxu0 0.0
    %988 = vmatpush2.msra.mxu0 0.0
    %989 = vmatprep.subr.mxu0 0.0
    %990 = vmatpush2.msra.mxu0 0.0
    %991 = vmatprep.subr.mxu0 0.0
    %992 = vmatpush2.msra.mxu0 0.0
    %993 = vmatprep.subr.mxu0 0.0
    %994 = vmatpush2.msra.mxu0 0.0
    %995 = vmatprep.subr.mxu0 0.0
    %996 = vmatpush2.msra.mxu0 0.0
    %997 = vmatprep.subr.mxu0 0.0
    %998 = vmatpush2.msra.mxu0 0.0
    %999 = vmatprep.subr.mxu0 0.0
    %1000 = vmatpush2.msra.mxu0 0.0
    %1001 = vmatprep.subr.mxu0 0.0
    %1002 = vmatpush2.msra.mxu0 0.0
    %1003 = vmatprep.subr.mxu0 0.0
    %1004 = vmatpush2.msra.mxu0 0.0
    %1005 = vmatprep.subr.mxu0 0.0
    %1006 = vmatpush2.msra.mxu0 0.0
    %1007 = vmatprep.subr.mxu0 0.0
    %1008 = vmatpush2.msra.mxu0 0.0
    %1009 = vmatprep.mubr.f32.mxu0 0.0
    %1010 = vmatmul.mubr.f32.gmra.mxu0 %v943
    %v1011 = vpop.f32.mrf.mxu0
    %v1012 = vadd.f32 %v940, %v1011
    %v1013 = vpop.f32.mrf.mxu0
    %1014 = vdwg.mxu0
    %v1015 = vadd.f32 %v822, %v1012
    %v1016 = vsel %vm825, %v1015, 0.0
    %1017 = vadd.xlane.f32.xlu0 %v1016
    %v1018 = vpop.xlane.xlu0 %1017
    %v1019 = vmul.f32 %v1018, %v181
    %v1020 = vmul.f32 %v1015, %v1015
    %v1021 = vsel %vm825, %v1020, 0.0
    %1022 = vadd.xlane.f32.xlu0 %v1021
    %v1023 = vpop.xlane.xlu0 %1022
    %v1024 = vmul.f32 %v1023, %v181
    %v1025 = vmul.f32 %v1019, %v1019
    %v1026 = vsub.f32 %v1024, %v1025
    %v1027 = vsub.f32 %v1015, %v1019
    %v1028 = vadd.f32 %v1026, 1e-05
    %v1029 = vrsqrt.pop %v1028
    %v1030 = vmul.f32 %v1027, %v1029
    %v1031 = vlaneseq
    %v1032 = vshrl.u32 %v1031, 7
    %v1033 = vsub.s32 0, %v1032
    %v1034 = vrot.slane %v81, %v1033
    %v1035 = vmul.f32 %v1030, %v1034
    %v1036 = vlaneseq
    %v1037 = vshrl.u32 %v1036, 7
    %v1038 = vsub.s32 0, %v1037
    %v1039 = vrot.slane %v82, %v1038
    %v1040 = vadd.f32 %v1035, %v1039
    %v1041 = vlaneseq
    %v1042 = vshrl.u32 %v1041, 7
    %v1043 = vsub.s32 0, %v1042
    %v1044 = vrot.slane %v85, %v1043
    %v1046 = vsel %vm174, %v1040, 0
    %1048 = vmatprep.subr.mxu0 0.0
    %1049 = vmatpush1.msra.mxu0 0.0
    %1050 = vmatprep.subr.mxu0 0.0
    %1051 = vmatpush1.msra.mxu0 0.0
    %1052 = vmatprep.subr.mxu0 0.0
    %1053 = vmatpush1.msra.mxu0 0.0
    %1054 = vmatprep.subr.mxu0 0.0
    %1055 = vmatpush1.msra.mxu0 0.0
    %1056 = vmatprep.subr.mxu0 0.0
    %1057 = vmatpush1.msra.mxu0 0.0
    %1058 = vmatprep.subr.mxu0 0.0
    %1059 = vmatpush1.msra.mxu0 0.0
    %1060 = vmatprep.subr.mxu0 0.0
    %1061 = vmatpush1.msra.mxu0 0.0
    %1062 = vmatprep.subr.mxu0 0.0
    %1063 = vmatpush1.msra.mxu0 0.0
    %1064 = vmatprep.subr.mxu0 0.0
    %1065 = vmatpush1.msra.mxu0 0.0
    %1066 = vmatprep.subr.mxu0 0.0
    %1067 = vmatpush1.msra.mxu0 0.0
    %1068 = vmatprep.subr.mxu0 0.0
    %1069 = vmatpush1.msra.mxu0 0.0
    %1070 = vmatprep.subr.mxu0 0.0
    %1071 = vmatpush1.msra.mxu0 0.0
    %1072 = vmatprep.subr.mxu0 0.0
    %1073 = vmatpush1.msra.mxu0 %v75
    %1074 = vmatprep.subr.mxu0 0.0
    %1075 = vmatpush1.msra.mxu0 %v74
    %1076 = vmatprep.subr.mxu0 0.0
    %1077 = vmatpush1.msra.mxu0 %v73
    %1078 = vmatprep.subr.mxu0 0.0
    %1079 = vmatpush1.msra.mxu0 %v72
    %1080 = vmatprep.subr.mxu0 0.0
    %1081 = vmatpush2.msra.mxu0 0.0
    %1082 = vmatprep.subr.mxu0 0.0
    %1083 = vmatpush2.msra.mxu0 0.0
    %1084 = vmatprep.subr.mxu0 0.0
    %1085 = vmatpush2.msra.mxu0 0.0
    %1086 = vmatprep.subr.mxu0 0.0
    %1087 = vmatpush2.msra.mxu0 0.0
    %1088 = vmatprep.subr.mxu0 0.0
    %1089 = vmatpush2.msra.mxu0 0.0
    %1090 = vmatprep.subr.mxu0 0.0
    %1091 = vmatpush2.msra.mxu0 0.0
    %1092 = vmatprep.subr.mxu0 0.0
    %1093 = vmatpush2.msra.mxu0 0.0
    %1094 = vmatprep.subr.mxu0 0.0
    %1095 = vmatpush2.msra.mxu0 0.0
    %1096 = vmatprep.subr.mxu0 0.0
    %1097 = vmatpush2.msra.mxu0 0.0
    %1098 = vmatprep.subr.mxu0 0.0
    %1099 = vmatpush2.msra.mxu0 0.0
    %1100 = vmatprep.subr.mxu0 0.0
    %1101 = vmatpush2.msra.mxu0 0.0
    %1102 = vmatprep.subr.mxu0 0.0
    %1103 = vmatpush2.msra.mxu0 0.0
    %1104 = vmatprep.subr.mxu0 0.0
    %1105 = vmatpush2.msra.mxu0 0.0
    %1106 = vmatprep.subr.mxu0 0.0
    %1107 = vmatpush2.msra.mxu0 0.0
    %1108 = vmatprep.subr.mxu0 0.0
    %1109 = vmatpush2.msra.mxu0 0.0
    %1110 = vmatprep.subr.mxu0 0.0
    %1111 = vmatpush2.msra.mxu0 0.0
    %1112 = vmatprep.mubr.f32.mxu0 0.0
    %1113 = vmatmul.mubr.f32.gmra.mxu0 %v1046
    %v1114 = vpop.f32.mrf.mxu0
    %v1115 = vadd.f32 %v1044, %v1114
    %v1116 = vpop.f32.mrf.mxu0
    %1117 = vdwg.mxu0
    %1118 = vst [vmem:[#allocation7] sm:$0x3] %v1115
    // Predicated region
    $region18: #{llmcc_forward.1} parent=1 // pred_check
      _
    $region19: #{llmcc_forward.1} parent=1 // pred_check_branch
      %1120 = sbr.rel (0) target = $region21
    $region20: #{llmcc_forward.1} parent=1 // pred_region
      %s1122 = ssub.s32 32, 32
      %1123 = vsyncadd [#allocation4], %s1122
      %s1125 = sshll.u32 [#allocation7], 4
      %s1126 = int_to_ptr.vmem [resolvable:$true] %s1125
      %1128 = dma.vmem_to_hbm [thread:$0]  %s1126, 32, %s2, [#allocation4]
    $region21: #{llmcc_forward.1} parent=1 // pred_fallthru
      _
    // Predicated region
    $region22: #{llmcc_forward.1} parent=1 // pred_check
      _
    $region23: #{llmcc_forward.1} parent=1 // pred_check_branch
      %1130 = sbr.rel (0) target = $region25
    $region24: #{llmcc_forward.1} parent=1 // pred_region
      %1131 = dma.done [#allocation4], 32
    $region25: #{llmcc_forward.1} parent=1 // pred_fallthru
      _
    %1132 = vsyncpa [#allocation3], 1
    %1133 = vsyncpa [#allocation6], 1
    %1134 = vsyncpa [#allocation4], 1

</llo_original>
